<compile_context>
chip_gen: v5e
topology: v5e:2x2
jax: 0.10.0
libtpu: 0.0.40
codegen_flags: <defaults>
</compile_context>

<pallas_src>
import functools

import jax
import jax.numpy as jnp
from jax.experimental import pallas as pl
from jax.experimental.pallas import tpu as pltpu

_SUB = 8      # f32 sublane granularity
_LANE = 128   # lane granularity


def _round_up(x, m):
    return ((x + m - 1) // m) * m


def _round_down(x, m):
    return (x // m) * m


def _matvec_full_k_kernel(a_ref, b_ref, o_ref):
    # One (tm, K) block of A per grid step; B resident as (K, 1).
    o_ref[...] = jnp.dot(
        a_ref[...], b_ref[...], preferred_element_type=jnp.float32
    ).astype(o_ref.dtype)


def _matvec_tiled_k_kernel(a_ref, b_ref, o_ref, *, k_total, tk):
    # Grid: (M tiles, K tiles); K is the (last, "arbitrary") reduction axis.
    # Output block index is constant along K, so o_ref is the resident
    # accumulator (no VMEM scratch needed).
    k = pl.program_id(1)

    @pl.when(k == 0)
    def _():
        o_ref[...] = jnp.zeros_like(o_ref)

    a = a_ref[...]
    b = b_ref[...]
    if k_total % tk != 0:
        # Ragged K tail: out-of-bounds loads are undefined, so zero them out
        # before the dot (applies only to the last K step's extra columns).
        col = jax.lax.broadcasted_iota(jnp.int32, a.shape, 1) + k * tk
        a = jnp.where(col < k_total, a, 0.0)
        row = jax.lax.broadcasted_iota(jnp.int32, b.shape, 0) + k * tk
        b = jnp.where(row < k_total, b, 0.0)

    o_ref[...] += jnp.dot(a, b, preferred_element_type=jnp.float32)


def matvec_mul(A: jax.Array, B: jax.Array, *, block_budget_bytes: int = 8 * 1024 * 1024) -> jax.Array:
    """C[m, 0] = sum_k A[m, k] * B[k]. Returns shape (M, 1) float32."""
    M, K = A.shape
    A = A.astype(jnp.float32)
    Bcol = B.astype(jnp.float32).reshape(K, 1)
    itemsize = 4
    vmem_limit = 32 * 1024 * 1024  # safe on v5e (128 MiB), v6e (128 MiB), v7x (64 MiB)

    # Largest multiple-of-8 M tile whose full-K block fits the per-block budget
    # (double-buffered by the pipeline -> 2 * block_budget_bytes of VMEM).
    max_tm_full_k = _round_down(block_budget_bytes // max(K * itemsize, 1), _SUB)

    if max_tm_full_k >= _SUB:
        # ---- Fast path: collapse the reduction; grid over M only. ----
        tm = max(_SUB, min(max_tm_full_k, _round_up(M, _SUB)))
        grid = (pl.cdiv(M, tm),)
        return pl.pallas_call(
            _matvec_full_k_kernel,
            out_shape=jax.ShapeDtypeStruct((M, 1), jnp.float32),
            grid_spec=pltpu.PrefetchScalarGridSpec(
                num_scalar_prefetch=0,
                grid=grid,
                in_specs=[
                    pl.BlockSpec((tm, K), lambda i: (i, 0)),
                    pl.BlockSpec((K, 1), lambda i: (0, 0)),   # B resident, DMA'd once
                ],
                out_specs=pl.BlockSpec((tm, 1), lambda i: (i, 0)),
            ),
            compiler_params=pltpu.CompilerParams(
                dimension_semantics=("parallel",),
                vmem_limit_bytes=vmem_limit,
            ),
        )(A, Bcol)

    # ---- Fallback: K too large for a full-K block; tile K, accumulate into o_ref. ----
    tm = max(_SUB, min(256, _round_up(M, _SUB)))
    tk = _round_down(block_budget_bytes // (tm * itemsize), _LANE)
    tk = max(_LANE, min(tk, _round_up(K, _LANE)))
    grid = (pl.cdiv(M, tm), pl.cdiv(K, tk))
    kernel = functools.partial(_matvec_tiled_k_kernel, k_total=K, tk=tk)
    return pl.pallas_call(
        kernel,
        out_shape=jax.ShapeDtypeStruct((M, 1), jnp.float32),
        grid_spec=pltpu.PrefetchScalarGridSpec(
            num_scalar_prefetch=0,
            grid=grid,
            in_specs=[
                pl.BlockSpec((tm, tk), lambda i, k: (i, k)),
                pl.BlockSpec((tk, 1), lambda i, k: (k, 0)),
            ],
            out_specs=pl.BlockSpec((tm, 1), lambda i, k: (i, 0)),
        ),
        compiler_params=pltpu.CompilerParams(
            dimension_semantics=("parallel", "arbitrary"),
            vmem_limit_bytes=vmem_limit,
        ),
    )(A, Bcol)


if __name__ == "__main__":
    key = jax.random.PRNGKey(0)
    k_a, k_b, k_c, k_d = jax.random.split(key, 4)

    # Test 1: fast path (full-K block), B given as (K, 1).
    M1, K1 = 256, 384
    A1 = jax.random.normal(k_a, (M1, K1), dtype=jnp.float32)
    B1 = jax.random.normal(k_b, (K1, 1), dtype=jnp.float32)
    C1 = jax.block_until_ready(matvec_mul(A1, B1))
    ref1 = A1 @ B1
    assert C1.shape == (M1, 1), C1.shape
    assert jnp.allclose(C1, ref1, atol=1e-3, rtol=1e-3), float(jnp.max(jnp.abs(C1 - ref1)))

    # Test 2: fast path with ragged M (M not a multiple of the sublane tile), B as (K,).
    M2, K2 = 100, 384
    A2 = jax.random.normal(k_c, (M2, K2), dtype=jnp.float32)
    B2 = jax.random.normal(k_d, (K2,), dtype=jnp.float32)
    C2 = jax.block_until_ready(matvec_mul(A2, B2))
    ref2 = (A2 @ B2).reshape(M2, 1)
    assert C2.shape == (M2, 1), C2.shape
    assert jnp.allclose(C2, ref2, atol=1e-3, rtol=1e-3), float(jnp.max(jnp.abs(C2 - ref2)))

    # Test 3: force the K-tiled fallback (tiny budget) with a ragged K tail.
    M3, K3 = 40, 1000
    A3 = jax.random.normal(k_a, (M3, K3), dtype=jnp.float32)
    B3 = jax.random.normal(k_b, (K3,), dtype=jnp.float32)
    C3 = jax.block_until_ready(matvec_mul(A3, B3, block_budget_bytes=8 * 1024))
    ref3 = (A3 @ B3).reshape(M3, 1)
    assert C3.shape == (M3, 1), C3.shape
    assert jnp.allclose(C3, ref3, atol=1e-3, rtol=1e-3), float(jnp.max(jnp.abs(C3 - ref3)))

    print("KERNEL_OK")
</pallas_src>

<mosaic_0001>
module attributes {stable_mosaic.version = 11 : i64} {
  func.func @_matvec_full_k_kernel(%arg0: i32, %arg1: memref<256x384xf32, #tpu.memory_space<vmem>>, %arg2: memref<384x1xf32, #tpu.memory_space<vmem>>, %arg3: memref<256x1xf32, #tpu.memory_space<vmem>>) attributes {dimension_semantics = [#tpu.dimension_semantics<parallel>], iteration_bounds = array<i64: 1>, scalar_prefetch = 0 : i64, scratch_operands = 0 : i64, tpu.core_type = #tpu.core_type<tc>, window_params = [{transform_indices = @transform_0, window_bounds = array<i64: 256, 384>}, {pipeline_mode = #tpu.pipeline_mode<synchronous>, transform_indices = @transform_1, window_bounds = array<i64: 384, 1>}, {transform_indices = @transform_2, window_bounds = array<i64: 256, 1>}]} {
    %c0 = arith.constant 0 : index
    %c0_0 = arith.constant 0 : index
    %0 = vector.load %arg1[%c0, %c0_0] : memref<256x384xf32, #tpu.memory_space<vmem>>, vector<256x384xf32>
    %c0_1 = arith.constant 0 : index
    %c0_2 = arith.constant 0 : index
    %1 = vector.load %arg2[%c0_1, %c0_2] : memref<384x1xf32, #tpu.memory_space<vmem>>, vector<384x1xf32>
    %cst = arith.constant dense<0.000000e+00> : vector<256x1xf32>
    %2 = tpu.matmul %0, %1, %cst {dimension_numbers = #tpu.dot_dimension_numbers<[1], [0], [0], [1], [0, 0, 1, 1], [], []>} : vector<256x384xf32>, vector<384x1xf32>, vector<256x1xf32> -> vector<256x1xf32>
    %c0_3 = arith.constant 0 : index
    %c0_4 = arith.constant 0 : index
    %3 = vector.load %arg3[%c0_3, %c0_4] : memref<256x1xf32, #tpu.memory_space<vmem>>, vector<256x1xf32>
    tpu.vector_store %arg3[%c0_3, %c0_4], %2 {strides = array<i32>} : memref<256x1xf32, #tpu.memory_space<vmem>>, vector<256x1xf32>,
    return
  }
  func.func @transform_0(%arg0: i32) -> (i32, i32) {
    %c0_i32 = arith.constant 0 : i32
    %c0_i32_0 = arith.constant 0 : i32
    return %arg0, %c0_i32 : i32, i32
  }
  func.func @transform_1(%arg0: i32) -> (i32, i32) {
    %c0_i32 = arith.constant 0 : i32
    %c0_i32_0 = arith.constant 0 : i32
    %c0_i32_1 = arith.constant 0 : i32
    return %c0_i32, %c0_i32_0 : i32, i32
  }
  func.func @transform_2(%arg0: i32) -> (i32, i32) {
    %c0_i32 = arith.constant 0 : i32
    %c0_i32_0 = arith.constant 0 : i32
    return %arg0, %c0_i32 : i32, i32
  }
}

</mosaic_0001>

<llo_original>
// kernel: tpu_custom_call.1
$region0: #{tpu_custom_call.1}
  #allocation0 [shape = 'u32[]', space=smem, size = 0x4, offset = 0x4, fixed_abs, tag = 'smem constant byte address 0x4 - core index']
  #allocation1 [shape = 'u32[72,128]{1,0:T(1,128)}', space=vmem, size = 0x9000, scoped, tag = 'internal scratch']
  %s0 = inlined_call_operand.hbm [shape: f32[256,384], index: 0, kind: input, shape index: {}]
  %s1 = inlined_call_operand.vmem [shape: f32[384,1], index: 1, kind: input, shape index: {}]
  %s2 = inlined_call_operand.vmem [shape: f32[256,1], index: 2, kind: output, shape index: {}]
  %s3 = sld [smem:[#allocation0]]
  $region22: #{tpu_custom_call.1} parent=0
    _
  %s5 = ssub.s32 1, %s3
  %s6 = scalar_select 0, %s5, %s3
  $region1: #{tpu_custom_call.1} parent=0
    #allocation2 [shape = 'u8[393216]{0}', space=vmem, size = 0x60000, scoped, tag = 'input window, operand 0, single buffered']
    #allocation3 [shape = 's32[1]{0}', space=sflag, size = 0x4, scoped, tag = 'scoped memory for tpu_custom_call.1']
    %7 = vsyncpa [#allocation3], 0
    // Predicated region
    $region2: #{tpu_custom_call.1} parent=1 // pred_check
      _
    $region3: #{tpu_custom_call.1} parent=1 // pred_check_branch
      %9 = sbr.rel (0) target = $region5
    $region4: #{tpu_custom_call.1} parent=1 // pred_region
      %11 = vsyncadd [#allocation3], 0
      %s12 = sshll.u32 %s0, 4
      %s13 = int_to_ptr.hbm [resolvable:$true] %s12
      %s14 = sshll.u32 [#allocation2], 4
      %s15 = int_to_ptr.vmem [resolvable:$true] %s14
      %20 = dma.hbm_to_vmem [thread:$0]  %s13, 12288, %s15, [#allocation3], 384, 384, 24
    $region5: #{tpu_custom_call.1} parent=1 // pred_fallthru
      _
    // Predicated region
    $region6: #{tpu_custom_call.1} parent=1 // pred_check
      _
    $region7: #{tpu_custom_call.1} parent=1 // pred_check_branch
      %22 = sbr.rel (0) target = $region9
    $region8: #{tpu_custom_call.1} parent=1 // pred_region
      _
    $region9: #{tpu_custom_call.1} parent=1 // pred_fallthru
      _
    // Predicated region
    $region10: #{tpu_custom_call.1} parent=1 // pred_check
      _
    $region11: #{tpu_custom_call.1} parent=1 // pred_check_branch
      %24 = sbr.rel (0) target = $region13
    $region12: #{tpu_custom_call.1} parent=1 // pred_region
      %26 = dma.done [#allocation3], 12288
    $region13: #{tpu_custom_call.1} parent=1 // pred_fallthru
      _
    %v27 = vld [vmem:[#allocation2] sm:$0xff]
    %v28 = vld [vmem:[#allocation2 + $0x8] sm:$0xff]
    %v29 = vld [vmem:[#allocation2 + $0x10] sm:$0xff]
    %v30 = vld [vmem:[#allocation2 + $0x18] sm:$0xff]
    %v31 = vld [vmem:[#allocation2 + $0x20] sm:$0xff]
    %v32 = vld [vmem:[#allocation2 + $0x28] sm:$0xff]
    %v33 = vld [vmem:[#allocation2 + $0x30] sm:$0xff]
    %v34 = vld [vmem:[#allocation2 + $0x38] sm:$0xff]
    %v35 = vld [vmem:[#allocation2 + $0x40] sm:$0xff]
    %v36 = vld [vmem:[#allocation2 + $0x48] sm:$0xff]
    %v37 = vld [vmem:[#allocation2 + $0x50] sm:$0xff]
    %v38 = vld [vmem:[#allocation2 + $0x58] sm:$0xff]
    %v39 = vld [vmem:[#allocation2 + $0x60] sm:$0xff]
    %v40 = vld [vmem:[#allocation2 + $0x68] sm:$0xff]
    %v41 = vld [vmem:[#allocation2 + $0x70] sm:$0xff]
    %v42 = vld [vmem:[#allocation2 + $0x78] sm:$0xff]
    %v43 = vld [vmem:[#allocation2 + $0x80] sm:$0xff]
    %v44 = vld [vmem:[#allocation2 + $0x88] sm:$0xff]
    %v45 = vld [vmem:[#allocation2 + $0x90] sm:$0xff]
    %v46 = vld [vmem:[#allocation2 + $0x98] sm:$0xff]
    %v47 = vld [vmem:[#allocation2 + $0xa0] sm:$0xff]
    %v48 = vld [vmem:[#allocation2 + $0xa8] sm:$0xff]
    %v49 = vld [vmem:[#allocation2 + $0xb0] sm:$0xff]
    %v50 = vld [vmem:[#allocation2 + $0xb8] sm:$0xff]
    %v51 = vld [vmem:[#allocation2 + $0xc0] sm:$0xff]
    %v52 = vld [vmem:[#allocation2 + $0xc8] sm:$0xff]
    %v53 = vld [vmem:[#allocation2 + $0xd0] sm:$0xff]
    %v54 = vld [vmem:[#allocation2 + $0xd8] sm:$0xff]
    %v55 = vld [vmem:[#allocation2 + $0xe0] sm:$0xff]
    %v56 = vld [vmem:[#allocation2 + $0xe8] sm:$0xff]
    %v57 = vld [vmem:[#allocation2 + $0xf0] sm:$0xff]
    %v58 = vld [vmem:[#allocation2 + $0xf8] sm:$0xff]
    %v59 = vld [vmem:[#allocation2 + $0x100] sm:$0xff]
    %v60 = vld [vmem:[#allocation2 + $0x108] sm:$0xff]
    %v61 = vld [vmem:[#allocation2 + $0x110] sm:$0xff]
    %v62 = vld [vmem:[#allocation2 + $0x118] sm:$0xff]
    %v63 = vld [vmem:[#allocation2 + $0x120] sm:$0xff]
    %v64 = vld [vmem:[#allocation2 + $0x128] sm:$0xff]
    %v65 = vld [vmem:[#allocation2 + $0x130] sm:$0xff]
    %v66 = vld [vmem:[#allocation2 + $0x138] sm:$0xff]
    %v67 = vld [vmem:[#allocation2 + $0x140] sm:$0xff]
    %v68 = vld [vmem:[#allocation2 + $0x148] sm:$0xff]
    %v69 = vld [vmem:[#allocation2 + $0x150] sm:$0xff]
    %v70 = vld [vmem:[#allocation2 + $0x158] sm:$0xff]
    %v71 = vld [vmem:[#allocation2 + $0x160] sm:$0xff]
    %v72 = vld [vmem:[#allocation2 + $0x168] sm:$0xff]
    %v73 = vld [vmem:[#allocation2 + $0x170] sm:$0xff]
    %v74 = vld [vmem:[#allocation2 + $0x178] sm:$0xff]
    %v75 = vld [vmem:[#allocation2 + $0x180] sm:$0xff]
    %v76 = vld [vmem:[#allocation2 + $0x188] sm:$0xff]
    %v77 = vld [vmem:[#allocation2 + $0x190] sm:$0xff]
    %v78 = vld [vmem:[#allocation2 + $0x198] sm:$0xff]
    %v79 = vld [vmem:[#allocation2 + $0x1a0] sm:$0xff]
    %v80 = vld [vmem:[#allocation2 + $0x1a8] sm:$0xff]
    %v81 = vld [vmem:[#allocation2 + $0x1b0] sm:$0xff]
    %v82 = vld [vmem:[#allocation2 + $0x1b8] sm:$0xff]
    %v83 = vld [vmem:[#allocation2 + $0x1c0] sm:$0xff]
    %v84 = vld [vmem:[#allocation2 + $0x1c8] sm:$0xff]
    %v85 = vld [vmem:[#allocation2 + $0x1d0] sm:$0xff]
    %v86 = vld [vmem:[#allocation2 + $0x1d8] sm:$0xff]
    %v87 = vld [vmem:[#allocation2 + $0x1e0] sm:$0xff]
    %v88 = vld [vmem:[#allocation2 + $0x1e8] sm:$0xff]
    %v89 = vld [vmem:[#allocation2 + $0x1f0] sm:$0xff]
    %v90 = vld [vmem:[#allocation2 + $0x1f8] sm:$0xff]
    %v91 = vld [vmem:[#allocation2 + $0x200] sm:$0xff]
    %v92 = vld [vmem:[#allocation2 + $0x208] sm:$0xff]
    %v93 = vld [vmem:[#allocation2 + $0x210] sm:$0xff]
    %v94 = vld [vmem:[#allocation2 + $0x218] sm:$0xff]
    %v95 = vld [vmem:[#allocation2 + $0x220] sm:$0xff]
    %v96 = vld [vmem:[#allocation2 + $0x228] sm:$0xff]
    %v97 = vld [vmem:[#allocation2 + $0x230] sm:$0xff]
    %v98 = vld [vmem:[#allocation2 + $0x238] sm:$0xff]
    %v99 = vld [vmem:[#allocation2 + $0x240] sm:$0xff]
    %v100 = vld [vmem:[#allocation2 + $0x248] sm:$0xff]
    %v101 = vld [vmem:[#allocation2 + $0x250] sm:$0xff]
    %v102 = vld [vmem:[#allocation2 + $0x258] sm:$0xff]
    %v103 = vld [vmem:[#allocation2 + $0x260] sm:$0xff]
    %v104 = vld [vmem:[#allocation2 + $0x268] sm:$0xff]
    %v105 = vld [vmem:[#allocation2 + $0x270] sm:$0xff]
    %v106 = vld [vmem:[#allocation2 + $0x278] sm:$0xff]
    %v107 = vld [vmem:[#allocation2 + $0x280] sm:$0xff]
    %v108 = vld [vmem:[#allocation2 + $0x288] sm:$0xff]
    %v109 = vld [vmem:[#allocation2 + $0x290] sm:$0xff]
    %v110 = vld [vmem:[#allocation2 + $0x298] sm:$0xff]
    %v111 = vld [vmem:[#allocation2 + $0x2a0] sm:$0xff]
    %v112 = vld [vmem:[#allocation2 + $0x2a8] sm:$0xff]
    %v113 = vld [vmem:[#allocation2 + $0x2b0] sm:$0xff]
    %v114 = vld [vmem:[#allocation2 + $0x2b8] sm:$0xff]
    %v115 = vld [vmem:[#allocation2 + $0x2c0] sm:$0xff]
    %v116 = vld [vmem:[#allocation2 + $0x2c8] sm:$0xff]
    %v117 = vld [vmem:[#allocation2 + $0x2d0] sm:$0xff]
    %v118 = vld [vmem:[#allocation2 + $0x2d8] sm:$0xff]
    %v119 = vld [vmem:[#allocation2 + $0x2e0] sm:$0xff]
    %v120 = vld [vmem:[#allocation2 + $0x2e8] sm:$0xff]
    %v121 = vld [vmem:[#allocation2 + $0x2f0] sm:$0xff]
    %v122 = vld [vmem:[#allocation2 + $0x2f8] sm:$0xff]
    %v123 = vld [vmem:[%s1] sm:$0xff]
    %v124 = vld [vmem:[%s1 + $0x8] sm:$0xff]
    %v125 = vld [vmem:[%s1 + $0x10] sm:$0xff]
    %v126 = vld [vmem:[%s1 + $0x18] sm:$0xff]
    %v127 = vld [vmem:[%s1 + $0x20] sm:$0xff]
    %v128 = vld [vmem:[%s1 + $0x28] sm:$0xff]
    %v129 = vld [vmem:[%s1 + $0x30] sm:$0xff]
    %v130 = vld [vmem:[%s1 + $0x38] sm:$0xff]
    %v131 = vld [vmem:[%s1 + $0x40] sm:$0xff]
    %v132 = vld [vmem:[%s1 + $0x48] sm:$0xff]
    %v133 = vld [vmem:[%s1 + $0x50] sm:$0xff]
    %v134 = vld [vmem:[%s1 + $0x58] sm:$0xff]
    %v135 = vld [vmem:[%s1 + $0x60] sm:$0xff]
    %v136 = vld [vmem:[%s1 + $0x68] sm:$0xff]
    %v137 = vld [vmem:[%s1 + $0x70] sm:$0xff]
    %v138 = vld [vmem:[%s1 + $0x78] sm:$0xff]
    %v139 = vld [vmem:[%s1 + $0x80] sm:$0xff]
    %v140 = vld [vmem:[%s1 + $0x88] sm:$0xff]
    %v141 = vld [vmem:[%s1 + $0x90] sm:$0xff]
    %v142 = vld [vmem:[%s1 + $0x98] sm:$0xff]
    %v143 = vld [vmem:[%s1 + $0xa0] sm:$0xff]
    %v144 = vld [vmem:[%s1 + $0xa8] sm:$0xff]
    %v145 = vld [vmem:[%s1 + $0xb0] sm:$0xff]
    %v146 = vld [vmem:[%s1 + $0xb8] sm:$0xff]
    %v147 = vld [vmem:[%s1 + $0xc0] sm:$0xff]
    %v148 = vld [vmem:[%s1 + $0xc8] sm:$0xff]
    %v149 = vld [vmem:[%s1 + $0xd0] sm:$0xff]
    %v150 = vld [vmem:[%s1 + $0xd8] sm:$0xff]
    %v151 = vld [vmem:[%s1 + $0xe0] sm:$0xff]
    %v152 = vld [vmem:[%s1 + $0xe8] sm:$0xff]
    %v153 = vld [vmem:[%s1 + $0xf0] sm:$0xff]
    %v154 = vld [vmem:[%s1 + $0xf8] sm:$0xff]
    %v155 = vld [vmem:[%s1 + $0x100] sm:$0xff]
    %v156 = vld [vmem:[%s1 + $0x108] sm:$0xff]
    %v157 = vld [vmem:[%s1 + $0x110] sm:$0xff]
    %v158 = vld [vmem:[%s1 + $0x118] sm:$0xff]
    %v159 = vld [vmem:[%s1 + $0x120] sm:$0xff]
    %v160 = vld [vmem:[%s1 + $0x128] sm:$0xff]
    %v161 = vld [vmem:[%s1 + $0x130] sm:$0xff]
    %v162 = vld [vmem:[%s1 + $0x138] sm:$0xff]
    %v163 = vld [vmem:[%s1 + $0x140] sm:$0xff]
    %v164 = vld [vmem:[%s1 + $0x148] sm:$0xff]
    %v165 = vld [vmem:[%s1 + $0x150] sm:$0xff]
    %v166 = vld [vmem:[%s1 + $0x158] sm:$0xff]
    %v167 = vld [vmem:[%s1 + $0x160] sm:$0xff]
    %v168 = vld [vmem:[%s1 + $0x168] sm:$0xff]
    %v169 = vld [vmem:[%s1 + $0x170] sm:$0xff]
    %v170 = vld [vmem:[%s1 + $0x178] sm:$0xff]
    %171 = vmatpush.msra.mxu0 %v138
    %172 = vmatpush.msra.mxu0 %v137
    %173 = vmatpush.msra.mxu0 %v136
    %174 = vmatpush.msra.mxu0 %v135
    %175 = vmatpush.msra.mxu0 %v134
    %176 = vmatpush.msra.mxu0 %v133
    %177 = vmatpush.msra.mxu0 %v132
    %178 = vmatpush.msra.mxu0 %v131
    %179 = vmatpush.msra.mxu0 %v130
    %180 = vmatpush.msra.mxu0 %v129
    %181 = vmatpush.msra.mxu0 %v128
    %182 = vmatpush.msra.mxu0 %v127
    %183 = vmatpush.msra.mxu0 %v126
    %184 = vmatpush.msra.mxu0 %v125
    %185 = vmatpush.msra.mxu0 %v124
    %186 = vmatpush.msra.mxu0 %v123
    %187 = vmatmul.f32.gmra.mxu0 %v27
    %v188 = vpop.f32.mrf.mxu0
    %v189 = vadd.f32 0.0, %v188
    %190 = vmatmul.f32.gmra.mxu0 %v30
    %v191 = vpop.f32.mrf.mxu0
    %v192 = vadd.f32 0.0, %v191
    %193 = vmatmul.f32.gmra.mxu0 %v33
    %v194 = vpop.f32.mrf.mxu0
    %v195 = vadd.f32 0.0, %v194
    %196 = vmatmul.f32.gmra.mxu0 %v36
    %v197 = vpop.f32.mrf.mxu0
    %v198 = vadd.f32 0.0, %v197
    %199 = vmatmul.f32.gmra.mxu0 %v39
    %v200 = vpop.f32.mrf.mxu0
    %v201 = vadd.f32 0.0, %v200
    %202 = vmatmul.f32.gmra.mxu0 %v42
    %v203 = vpop.f32.mrf.mxu0
    %v204 = vadd.f32 0.0, %v203
    %205 = vmatmul.f32.gmra.mxu0 %v45
    %v206 = vpop.f32.mrf.mxu0
    %v207 = vadd.f32 0.0, %v206
    %208 = vmatmul.f32.gmra.mxu0 %v48
    %v209 = vpop.f32.mrf.mxu0
    %v210 = vadd.f32 0.0, %v209
    %211 = vmatmul.f32.gmra.mxu0 %v51
    %v212 = vpop.f32.mrf.mxu0
    %v213 = vadd.f32 0.0, %v212
    %214 = vmatmul.f32.gmra.mxu0 %v54
    %v215 = vpop.f32.mrf.mxu0
    %v216 = vadd.f32 0.0, %v215
    %217 = vmatmul.f32.gmra.mxu0 %v57
    %v218 = vpop.f32.mrf.mxu0
    %v219 = vadd.f32 0.0, %v218
    %220 = vmatmul.f32.gmra.mxu0 %v60
    %v221 = vpop.f32.mrf.mxu0
    %v222 = vadd.f32 0.0, %v221
    %223 = vmatmul.f32.gmra.mxu0 %v63
    %v224 = vpop.f32.mrf.mxu0
    %v225 = vadd.f32 0.0, %v224
    %226 = vmatmul.f32.gmra.mxu0 %v66
    %v227 = vpop.f32.mrf.mxu0
    %v228 = vadd.f32 0.0, %v227
    %229 = vmatmul.f32.gmra.mxu0 %v69
    %v230 = vpop.f32.mrf.mxu0
    %v231 = vadd.f32 0.0, %v230
    %232 = vmatmul.f32.gmra.mxu0 %v72
    %v233 = vpop.f32.mrf.mxu0
    %v234 = vadd.f32 0.0, %v233
    %235 = vmatmul.f32.gmra.mxu0 %v75
    %v236 = vpop.f32.mrf.mxu0
    %v237 = vadd.f32 0.0, %v236
    %238 = vmatmul.f32.gmra.mxu0 %v78
    %v239 = vpop.f32.mrf.mxu0
    %v240 = vadd.f32 0.0, %v239
    %241 = vmatmul.f32.gmra.mxu0 %v81
    %v242 = vpop.f32.mrf.mxu0
    %v243 = vadd.f32 0.0, %v242
    %244 = vmatmul.f32.gmra.mxu0 %v84
    %v245 = vpop.f32.mrf.mxu0
    %v246 = vadd.f32 0.0, %v245
    %247 = vmatmul.f32.gmra.mxu0 %v87
    %v248 = vpop.f32.mrf.mxu0
    %v249 = vadd.f32 0.0, %v248
    %250 = vmatmul.f32.gmra.mxu0 %v90
    %v251 = vpop.f32.mrf.mxu0
    %v252 = vadd.f32 0.0, %v251
    %253 = vmatmul.f32.gmra.mxu0 %v93
    %v254 = vpop.f32.mrf.mxu0
    %v255 = vadd.f32 0.0, %v254
    %256 = vmatmul.f32.gmra.mxu0 %v96
    %v257 = vpop.f32.mrf.mxu0
    %v258 = vadd.f32 0.0, %v257
    %259 = vmatmul.f32.gmra.mxu0 %v99
    %v260 = vpop.f32.mrf.mxu0
    %v261 = vadd.f32 0.0, %v260
    %262 = vmatmul.f32.gmra.mxu0 %v102
    %v263 = vpop.f32.mrf.mxu0
    %v264 = vadd.f32 0.0, %v263
    %265 = vmatmul.f32.gmra.mxu0 %v105
    %v266 = vpop.f32.mrf.mxu0
    %v267 = vadd.f32 0.0, %v266
    %268 = vmatmul.f32.gmra.mxu0 %v108
    %v269 = vpop.f32.mrf.mxu0
    %v270 = vadd.f32 0.0, %v269
    %271 = vmatmul.f32.gmra.mxu0 %v111
    %v272 = vpop.f32.mrf.mxu0
    %v273 = vadd.f32 0.0, %v272
    %274 = vmatmul.f32.gmra.mxu0 %v114
    %v275 = vpop.f32.mrf.mxu0
    %v276 = vadd.f32 0.0, %v275
    %277 = vmatmul.f32.gmra.mxu0 %v117
    %v278 = vpop.f32.mrf.mxu0
    %v279 = vadd.f32 0.0, %v278
    %280 = vmatmul.f32.gmra.mxu0 %v120
    %v281 = vpop.f32.mrf.mxu0
    %v282 = vadd.f32 0.0, %v281
    %283 = vdwg.mxu0
    %284 = vmatpush.msra.mxu0 %v154
    %285 = vmatpush.msra.mxu0 %v153
    %286 = vmatpush.msra.mxu0 %v152
    %287 = vmatpush.msra.mxu0 %v151
    %288 = vmatpush.msra.mxu0 %v150
    %289 = vmatpush.msra.mxu0 %v149
    %290 = vmatpush.msra.mxu0 %v148
    %291 = vmatpush.msra.mxu0 %v147
    %292 = vmatpush.msra.mxu0 %v146
    %293 = vmatpush.msra.mxu0 %v145
    %294 = vmatpush.msra.mxu0 %v144
    %295 = vmatpush.msra.mxu0 %v143
    %296 = vmatpush.msra.mxu0 %v142
    %297 = vmatpush.msra.mxu0 %v141
    %298 = vmatpush.msra.mxu0 %v140
    %299 = vmatpush.msra.mxu0 %v139
    %300 = vmatmul.f32.gmra.mxu0 %v28
    %v301 = vpop.f32.mrf.mxu0
    %v302 = vadd.f32 %v189, %v301
    %303 = vmatmul.f32.gmra.mxu0 %v31
    %v304 = vpop.f32.mrf.mxu0
    %v305 = vadd.f32 %v192, %v304
    %306 = vmatmul.f32.gmra.mxu0 %v34
    %v307 = vpop.f32.mrf.mxu0
    %v308 = vadd.f32 %v195, %v307
    %309 = vmatmul.f32.gmra.mxu0 %v37
    %v310 = vpop.f32.mrf.mxu0
    %v311 = vadd.f32 %v198, %v310
    %312 = vmatmul.f32.gmra.mxu0 %v40
    %v313 = vpop.f32.mrf.mxu0
    %v314 = vadd.f32 %v201, %v313
    %315 = vmatmul.f32.gmra.mxu0 %v43
    %v316 = vpop.f32.mrf.mxu0
    %v317 = vadd.f32 %v204, %v316
    %318 = vmatmul.f32.gmra.mxu0 %v46
    %v319 = vpop.f32.mrf.mxu0
    %v320 = vadd.f32 %v207, %v319
    %321 = vmatmul.f32.gmra.mxu0 %v49
    %v322 = vpop.f32.mrf.mxu0
    %v323 = vadd.f32 %v210, %v322
    %324 = vmatmul.f32.gmra.mxu0 %v52
    %v325 = vpop.f32.mrf.mxu0
    %v326 = vadd.f32 %v213, %v325
    %327 = vmatmul.f32.gmra.mxu0 %v55
    %v328 = vpop.f32.mrf.mxu0
    %v329 = vadd.f32 %v216, %v328
    %330 = vmatmul.f32.gmra.mxu0 %v58
    %v331 = vpop.f32.mrf.mxu0
    %v332 = vadd.f32 %v219, %v331
    %333 = vmatmul.f32.gmra.mxu0 %v61
    %v334 = vpop.f32.mrf.mxu0
    %v335 = vadd.f32 %v222, %v334
    %336 = vmatmul.f32.gmra.mxu0 %v64
    %v337 = vpop.f32.mrf.mxu0
    %v338 = vadd.f32 %v225, %v337
    %339 = vmatmul.f32.gmra.mxu0 %v67
    %v340 = vpop.f32.mrf.mxu0
    %v341 = vadd.f32 %v228, %v340
    %342 = vmatmul.f32.gmra.mxu0 %v70
    %v343 = vpop.f32.mrf.mxu0
    %v344 = vadd.f32 %v231, %v343
    %345 = vmatmul.f32.gmra.mxu0 %v73
    %v346 = vpop.f32.mrf.mxu0
    %v347 = vadd.f32 %v234, %v346
    %348 = vmatmul.f32.gmra.mxu0 %v76
    %v349 = vpop.f32.mrf.mxu0
    %v350 = vadd.f32 %v237, %v349
    %351 = vmatmul.f32.gmra.mxu0 %v79
    %v352 = vpop.f32.mrf.mxu0
    %v353 = vadd.f32 %v240, %v352
    %354 = vmatmul.f32.gmra.mxu0 %v82
    %v355 = vpop.f32.mrf.mxu0
    %v356 = vadd.f32 %v243, %v355
    %357 = vmatmul.f32.gmra.mxu0 %v85
    %v358 = vpop.f32.mrf.mxu0
    %v359 = vadd.f32 %v246, %v358
    %360 = vmatmul.f32.gmra.mxu0 %v88
    %v361 = vpop.f32.mrf.mxu0
    %v362 = vadd.f32 %v249, %v361
    %363 = vmatmul.f32.gmra.mxu0 %v91
    %v364 = vpop.f32.mrf.mxu0
    %v365 = vadd.f32 %v252, %v364
    %366 = vmatmul.f32.gmra.mxu0 %v94
    %v367 = vpop.f32.mrf.mxu0
    %v368 = vadd.f32 %v255, %v367
    %369 = vmatmul.f32.gmra.mxu0 %v97
    %v370 = vpop.f32.mrf.mxu0
    %v371 = vadd.f32 %v258, %v370
    %372 = vmatmul.f32.gmra.mxu0 %v100
    %v373 = vpop.f32.mrf.mxu0
    %v374 = vadd.f32 %v261, %v373
    %375 = vmatmul.f32.gmra.mxu0 %v103
    %v376 = vpop.f32.mrf.mxu0
    %v377 = vadd.f32 %v264, %v376
    %378 = vmatmul.f32.gmra.mxu0 %v106
    %v379 = vpop.f32.mrf.mxu0
    %v380 = vadd.f32 %v267, %v379
    %381 = vmatmul.f32.gmra.mxu0 %v109
    %v382 = vpop.f32.mrf.mxu0
    %v383 = vadd.f32 %v270, %v382
    %384 = vmatmul.f32.gmra.mxu0 %v112
    %v385 = vpop.f32.mrf.mxu0
    %v386 = vadd.f32 %v273, %v385
    %387 = vmatmul.f32.gmra.mxu0 %v115
    %v388 = vpop.f32.mrf.mxu0
    %v389 = vadd.f32 %v276, %v388
    %390 = vmatmul.f32.gmra.mxu0 %v118
    %v391 = vpop.f32.mrf.mxu0
    %v392 = vadd.f32 %v279, %v391
    %393 = vmatmul.f32.gmra.mxu0 %v121
    %v394 = vpop.f32.mrf.mxu0
    %v395 = vadd.f32 %v282, %v394
    %396 = vdwg.mxu0
    %397 = vmatpush.msra.mxu0 %v170
    %398 = vmatpush.msra.mxu0 %v169
    %399 = vmatpush.msra.mxu0 %v168
    %400 = vmatpush.msra.mxu0 %v167
    %401 = vmatpush.msra.mxu0 %v166
    %402 = vmatpush.msra.mxu0 %v165
    %403 = vmatpush.msra.mxu0 %v164
    %404 = vmatpush.msra.mxu0 %v163
    %405 = vmatpush.msra.mxu0 %v162
    %406 = vmatpush.msra.mxu0 %v161
    %407 = vmatpush.msra.mxu0 %v160
    %408 = vmatpush.msra.mxu0 %v159
    %409 = vmatpush.msra.mxu0 %v158
    %410 = vmatpush.msra.mxu0 %v157
    %411 = vmatpush.msra.mxu0 %v156
    %412 = vmatpush.msra.mxu0 %v155
    %413 = vmatmul.f32.gmra.mxu0 %v29
    %v414 = vpop.f32.mrf.mxu0
    %v415 = vadd.f32 %v302, %v414
    %416 = vmatmul.f32.gmra.mxu0 %v32
    %v417 = vpop.f32.mrf.mxu0
    %v418 = vadd.f32 %v305, %v417
    %419 = vmatmul.f32.gmra.mxu0 %v35
    %v420 = vpop.f32.mrf.mxu0
    %v421 = vadd.f32 %v308, %v420
    %422 = vmatmul.f32.gmra.mxu0 %v38
    %v423 = vpop.f32.mrf.mxu0
    %v424 = vadd.f32 %v311, %v423
    %425 = vmatmul.f32.gmra.mxu0 %v41
    %v426 = vpop.f32.mrf.mxu0
    %v427 = vadd.f32 %v314, %v426
    %428 = vmatmul.f32.gmra.mxu0 %v44
    %v429 = vpop.f32.mrf.mxu0
    %v430 = vadd.f32 %v317, %v429
    %431 = vmatmul.f32.gmra.mxu0 %v47
    %v432 = vpop.f32.mrf.mxu0
    %v433 = vadd.f32 %v320, %v432
    %434 = vmatmul.f32.gmra.mxu0 %v50
    %v435 = vpop.f32.mrf.mxu0
    %v436 = vadd.f32 %v323, %v435
    %437 = vmatmul.f32.gmra.mxu0 %v53
    %v438 = vpop.f32.mrf.mxu0
    %v439 = vadd.f32 %v326, %v438
    %440 = vmatmul.f32.gmra.mxu0 %v56
    %v441 = vpop.f32.mrf.mxu0
    %v442 = vadd.f32 %v329, %v441
    %443 = vmatmul.f32.gmra.mxu0 %v59
    %v444 = vpop.f32.mrf.mxu0
    %v445 = vadd.f32 %v332, %v444
    %446 = vmatmul.f32.gmra.mxu0 %v62
    %v447 = vpop.f32.mrf.mxu0
    %v448 = vadd.f32 %v335, %v447
    %449 = vmatmul.f32.gmra.mxu0 %v65
    %v450 = vpop.f32.mrf.mxu0
    %v451 = vadd.f32 %v338, %v450
    %452 = vmatmul.f32.gmra.mxu0 %v68
    %v453 = vpop.f32.mrf.mxu0
    %v454 = vadd.f32 %v341, %v453
    %455 = vmatmul.f32.gmra.mxu0 %v71
    %v456 = vpop.f32.mrf.mxu0
    %v457 = vadd.f32 %v344, %v456
    %458 = vmatmul.f32.gmra.mxu0 %v74
    %v459 = vpop.f32.mrf.mxu0
    %v460 = vadd.f32 %v347, %v459
    %461 = vmatmul.f32.gmra.mxu0 %v77
    %v462 = vpop.f32.mrf.mxu0
    %v463 = vadd.f32 %v350, %v462
    %464 = vmatmul.f32.gmra.mxu0 %v80
    %v465 = vpop.f32.mrf.mxu0
    %v466 = vadd.f32 %v353, %v465
    %467 = vmatmul.f32.gmra.mxu0 %v83
    %v468 = vpop.f32.mrf.mxu0
    %v469 = vadd.f32 %v356, %v468
    %470 = vmatmul.f32.gmra.mxu0 %v86
    %v471 = vpop.f32.mrf.mxu0
    %v472 = vadd.f32 %v359, %v471
    %473 = vmatmul.f32.gmra.mxu0 %v89
    %v474 = vpop.f32.mrf.mxu0
    %v475 = vadd.f32 %v362, %v474
    %476 = vmatmul.f32.gmra.mxu0 %v92
    %v477 = vpop.f32.mrf.mxu0
    %v478 = vadd.f32 %v365, %v477
    %479 = vmatmul.f32.gmra.mxu0 %v95
    %v480 = vpop.f32.mrf.mxu0
    %v481 = vadd.f32 %v368, %v480
    %482 = vmatmul.f32.gmra.mxu0 %v98
    %v483 = vpop.f32.mrf.mxu0
    %v484 = vadd.f32 %v371, %v483
    %485 = vmatmul.f32.gmra.mxu0 %v101
    %v486 = vpop.f32.mrf.mxu0
    %v487 = vadd.f32 %v374, %v486
    %488 = vmatmul.f32.gmra.mxu0 %v104
    %v489 = vpop.f32.mrf.mxu0
    %v490 = vadd.f32 %v377, %v489
    %491 = vmatmul.f32.gmra.mxu0 %v107
    %v492 = vpop.f32.mrf.mxu0
    %v493 = vadd.f32 %v380, %v492
    %494 = vmatmul.f32.gmra.mxu0 %v110
    %v495 = vpop.f32.mrf.mxu0
    %v496 = vadd.f32 %v383, %v495
    %497 = vmatmul.f32.gmra.mxu0 %v113
    %v498 = vpop.f32.mrf.mxu0
    %v499 = vadd.f32 %v386, %v498
    %500 = vmatmul.f32.gmra.mxu0 %v116
    %v501 = vpop.f32.mrf.mxu0
    %v502 = vadd.f32 %v389, %v501
    %503 = vmatmul.f32.gmra.mxu0 %v119
    %v504 = vpop.f32.mrf.mxu0
    %v505 = vadd.f32 %v392, %v504
    %506 = vmatmul.f32.gmra.mxu0 %v122
    %v507 = vpop.f32.mrf.mxu0
    %v508 = vadd.f32 %v395, %v507
    %509 = vdwg.mxu0
    %vm510 = vcmask 7168
    %511 = vst.msk [vmem:[%s2] sm:$0xff] %vm510, %v415
    %512 = vst.msk [vmem:[%s2 + $0x8] sm:$0xff] %vm510, %v418
    %513 = vst.msk [vmem:[%s2 + $0x10] sm:$0xff] %vm510, %v421
    %514 = vst.msk [vmem:[%s2 + $0x18] sm:$0xff] %vm510, %v424
    %515 = vst.msk [vmem:[%s2 + $0x20] sm:$0xff] %vm510, %v427
    %516 = vst.msk [vmem:[%s2 + $0x28] sm:$0xff] %vm510, %v430
    %517 = vst.msk [vmem:[%s2 + $0x30] sm:$0xff] %vm510, %v433
    %518 = vst.msk [vmem:[%s2 + $0x38] sm:$0xff] %vm510, %v436
    %519 = vst.msk [vmem:[%s2 + $0x40] sm:$0xff] %vm510, %v439
    %520 = vst.msk [vmem:[%s2 + $0x48] sm:$0xff] %vm510, %v442
    %521 = vst.msk [vmem:[%s2 + $0x50] sm:$0xff] %vm510, %v445
    %522 = vst.msk [vmem:[%s2 + $0x58] sm:$0xff] %vm510, %v448
    %523 = vst.msk [vmem:[%s2 + $0x60] sm:$0xff] %vm510, %v451
    %524 = vst.msk [vmem:[%s2 + $0x68] sm:$0xff] %vm510, %v454
    %525 = vst.msk [vmem:[%s2 + $0x70] sm:$0xff] %vm510, %v457
    %526 = vst.msk [vmem:[%s2 + $0x78] sm:$0xff] %vm510, %v460
    %527 = vst.msk [vmem:[%s2 + $0x80] sm:$0xff] %vm510, %v463
    %528 = vst.msk [vmem:[%s2 + $0x88] sm:$0xff] %vm510, %v466
    %529 = vst.msk [vmem:[%s2 + $0x90] sm:$0xff] %vm510, %v469
    %530 = vst.msk [vmem:[%s2 + $0x98] sm:$0xff] %vm510, %v472
    %531 = vst.msk [vmem:[%s2 + $0xa0] sm:$0xff] %vm510, %v475
    %532 = vst.msk [vmem:[%s2 + $0xa8] sm:$0xff] %vm510, %v478
    %533 = vst.msk [vmem:[%s2 + $0xb0] sm:$0xff] %vm510, %v481
    %534 = vst.msk [vmem:[%s2 + $0xb8] sm:$0xff] %vm510, %v484
    %535 = vst.msk [vmem:[%s2 + $0xc0] sm:$0xff] %vm510, %v487
    %536 = vst.msk [vmem:[%s2 + $0xc8] sm:$0xff] %vm510, %v490
    %537 = vst.msk [vmem:[%s2 + $0xd0] sm:$0xff] %vm510, %v493
    %538 = vst.msk [vmem:[%s2 + $0xd8] sm:$0xff] %vm510, %v496
    %539 = vst.msk [vmem:[%s2 + $0xe0] sm:$0xff] %vm510, %v499
    %540 = vst.msk [vmem:[%s2 + $0xe8] sm:$0xff] %vm510, %v502
    %541 = vst.msk [vmem:[%s2 + $0xf0] sm:$0xff] %vm510, %v505
    %542 = vst.msk [vmem:[%s2 + $0xf8] sm:$0xff] %vm510, %v508
    // Predicated region
    $region14: #{tpu_custom_call.1} parent=1 // pred_check
      _
    $region15: #{tpu_custom_call.1} parent=1 // pred_check_branch
      %544 = sbr.rel (0) target = $region17
    $region16: #{tpu_custom_call.1} parent=1 // pred_region
      _
    $region17: #{tpu_custom_call.1} parent=1 // pred_fallthru
      _
    // Predicated region
    $region18: #{tpu_custom_call.1} parent=1 // pred_check
      _
    $region19: #{tpu_custom_call.1} parent=1 // pred_check_branch
      %546 = sbr.rel (0) target = $region21
    $region20: #{tpu_custom_call.1} parent=1 // pred_region
      _
    $region21: #{tpu_custom_call.1} parent=1 // pred_fallthru
      _
    %547 = vsyncpa [#allocation3], 1

</llo_original>
